<compile_context>
chip_gen: v7x
topology: tpu7x:2x2x1
jax: 0.10.0
libtpu: 0.0.40
codegen_flags: <defaults>
</compile_context>

<pallas_src>
import functools

import jax
import jax.numpy as jnp
from jax.experimental import pallas as pl
from jax.experimental.pallas import tpu as pltpu

HIDDEN = 100          # logical hidden size of the torch module
HIDDEN_PAD = 128      # padded to one full 128-lane vreg
NEG_SLOPE = 0.01      # default negative_slope of F.leaky_relu
LANE = 128
SUBLANE = 8


def _round_up(x, m):
    return (x + m - 1) // m * m


def _mlp_kernel(x_ref, w1_ref, b1_ref, w2_ref, b2_ref, o_ref, *, out_dim, out_pad):
    # fc1: x @ W1 + b1   (bf16 inputs, f32 accumulation on the MXU)
    h = jnp.dot(x_ref[...], w1_ref[...], preferred_element_type=jnp.float32)
    h = h + b1_ref[...]

    # leaky_relu in f32 on the VPU
    h = jnp.where(h >= 0, h, NEG_SLOPE * h)

    # fc2: h @ W2 + b2   (bf16 inputs, f32 accumulation)
    logits = jnp.dot(h.astype(jnp.bfloat16), w2_ref[...],
                     preferred_element_type=jnp.float32)
    logits = logits + b2_ref[...]

    # Mask padded output lanes so the softmax reduction ignores them.
    if out_pad > out_dim:
        lane = jax.lax.broadcasted_iota(jnp.int32, logits.shape, dimension=1)
        logits = jnp.where(lane < out_dim, logits, jnp.float32(-1e30))

    # Numerically stable log_softmax over the feature (lane) axis == torch dim=1.
    m = jnp.max(logits, axis=-1, keepdims=True)
    shifted = logits - m
    lse = jnp.log(jnp.sum(jnp.exp(shifted), axis=-1, keepdims=True))
    o_ref[...] = (shifted - lse).astype(o_ref.dtype)


def nn_forward(x, w1, b1, w2, b2, *, block_b=512):
    """x: [B, input_dim] f32; w1: [input_dim, 100]; b1: [100];
       w2: [100, output_dim]; b2: [output_dim]  (torch weights transposed to [in, out]).
       Returns log_softmax(fc2(leaky_relu(fc1(x)))) with shape [B, output_dim]."""
    B, in_dim = x.shape
    out_dim = w2.shape[1]
    out_pad = _round_up(out_dim, LANE)

    # --- pad hidden 100 -> 128 and output dim to a full lane width (zeros are inert) ---
    w1p = jnp.zeros((in_dim, HIDDEN_PAD), jnp.float32).at[:, :HIDDEN].set(w1)
    b1p = jnp.zeros((1, HIDDEN_PAD), jnp.float32).at[:, :HIDDEN].set(b1.reshape(1, -1))
    w2p = jnp.zeros((HIDDEN_PAD, out_pad), jnp.float32).at[:HIDDEN, :out_dim].set(w2)
    b2p = jnp.zeros((1, out_pad), jnp.float32).at[:, :out_dim].set(b2.reshape(1, -1))

    # --- batch tiling: stream x/out tiles, keep weights resident ---
    tb = _round_up(min(block_b, _round_up(B, SUBLANE)), SUBLANE)
    Bp = _round_up(B, tb)
    xp = x if Bp == B else jnp.zeros((Bp, in_dim), x.dtype).at[:B].set(x)

    # bf16 matmul operands (halves the x DMA bytes; MXU-native on v5e/v6e/v7x)
    xp = xp.astype(jnp.bfloat16)
    w1b = w1p.astype(jnp.bfloat16)
    w2b = w2p.astype(jnp.bfloat16)

    grid = (Bp // tb,)
    cost = pl.CostEstimate(
        flops=2 * Bp * (in_dim * HIDDEN_PAD + HIDDEN_PAD * out_pad),
        transcendentals=Bp * (out_pad + 1),
        bytes_accessed=(xp.size * 2 + Bp * out_pad * 4
                        + w1b.size * 2 + w2b.size * 2
                        + b1p.size * 4 + b2p.size * 4),
    )

    out = pl.pallas_call(
        functools.partial(_mlp_kernel, out_dim=out_dim, out_pad=out_pad),
        out_shape=jax.ShapeDtypeStruct((Bp, out_pad), jnp.float32),
        grid_spec=pltpu.PrefetchScalarGridSpec(
            num_scalar_prefetch=0,
            grid=grid,
            in_specs=[
                pl.BlockSpec((tb, in_dim), lambda i: (i, 0)),           # x: streamed tiles
                pl.BlockSpec((in_dim, HIDDEN_PAD), lambda i: (0, 0)),   # W1: resident
                pl.BlockSpec((1, HIDDEN_PAD), lambda i: (0, 0)),        # b1: resident
                pl.BlockSpec((HIDDEN_PAD, out_pad), lambda i: (0, 0)),  # W2: resident
                pl.BlockSpec((1, out_pad), lambda i: (0, 0)),           # b2: resident
            ],
            out_specs=pl.BlockSpec((tb, out_pad), lambda i: (i, 0)),
        ),
        compiler_params=pltpu.CompilerParams(
            dimension_semantics=("parallel",)),   # megacore sharding on v7x
        cost_estimate=cost,
    )(xp, w1b, b1p, w2b, b2p)

    return out[:B, :out_dim]


def init_params(key, input_dim, output_dim):
    """Deterministic init matching nn.Linear parameter shapes (weights as [in, out])."""
    k1, k2, k3, k4 = jax.random.split(key, 4)
    lim1 = 1.0 / jnp.sqrt(input_dim)
    lim2 = 1.0 / jnp.sqrt(HIDDEN)
    w1 = jax.random.uniform(k1, (input_dim, HIDDEN), jnp.float32, -lim1, lim1)
    b1 = jax.random.uniform(k2, (HIDDEN,), jnp.float32, -lim1, lim1)
    w2 = jax.random.uniform(k3, (HIDDEN, output_dim), jnp.float32, -lim2, lim2)
    b2 = jax.random.uniform(k4, (output_dim,), jnp.float32, -lim2, lim2)
    return w1, b1, w2, b2


def _reference(x, w1, b1, w2, b2):
    """Pure-JAX reference emulating the kernel's bf16-input / f32-accumulate matmuls."""
    bf = lambda a: a.astype(jnp.bfloat16).astype(jnp.float32)
    h = jnp.dot(bf(x), bf(w1), preferred_element_type=jnp.float32) + b1
    h = jnp.where(h >= 0, h, NEG_SLOPE * h)
    logits = jnp.dot(bf(h), bf(w2), preferred_element_type=jnp.float32) + b2
    return jax.nn.log_softmax(logits, axis=1)


if __name__ == "__main__":
    key = jax.random.PRNGKey(0)
    k_x, k_p = jax.random.split(key)

    B, input_dim, output_dim = 8, 32, 16
    x = jax.random.normal(k_x, (B, input_dim), jnp.float32)
    w1, b1, w2, b2 = init_params(k_p, input_dim, output_dim)

    out = nn_forward(x, w1, b1, w2, b2)
    jax.block_until_ready(out)

    ref = _reference(x, w1, b1, w2, b2)
    assert out.shape == (B, output_dim), f"bad output shape {out.shape}"
    assert jnp.allclose(out, ref, atol=1e-3, rtol=1e-3), "mismatch vs reference"

    print("KERNEL_OK")
</pallas_src>

<mosaic_0001>
module attributes {stable_mosaic.version = 11 : i64} {
  func.func @_mlp_kernel(%arg0: i32, %arg1: memref<8x32xbf16, #tpu.memory_space<vmem>>, %arg2: memref<32x128xbf16, #tpu.memory_space<vmem>>, %arg3: memref<1x128xf32, #tpu.memory_space<vmem>>, %arg4: memref<128x128xbf16, #tpu.memory_space<vmem>>, %arg5: memref<1x128xf32, #tpu.memory_space<vmem>>, %arg6: memref<8x128xf32, #tpu.memory_space<vmem>>) attributes {dimension_semantics = [#tpu.dimension_semantics<parallel>], iteration_bounds = array<i64: 1>, scalar_prefetch = 0 : i64, scratch_operands = 0 : i64, tpu.core_type = #tpu.core_type<tc>, window_params = [{transform_indices = @transform_0, window_bounds = array<i64: 8, 32>}, {pipeline_mode = #tpu.pipeline_mode<synchronous>, transform_indices = @transform_1, window_bounds = array<i64: 32, 128>}, {pipeline_mode = #tpu.pipeline_mode<synchronous>, transform_indices = @transform_2, window_bounds = array<i64: 1, 128>}, {pipeline_mode = #tpu.pipeline_mode<synchronous>, transform_indices = @transform_3, window_bounds = array<i64: 128, 128>}, {pipeline_mode = #tpu.pipeline_mode<synchronous>, transform_indices = @transform_4, window_bounds = array<i64: 1, 128>}, {transform_indices = @transform_5, window_bounds = array<i64: 8, 128>}]} {
    %c0 = arith.constant 0 : index
    %c0_0 = arith.constant 0 : index
    %0 = vector.load %arg1[%c0, %c0_0] : memref<8x32xbf16, #tpu.memory_space<vmem>>, vector<8x32xbf16>
    %c0_1 = arith.constant 0 : index
    %c0_2 = arith.constant 0 : index
    %1 = vector.load %arg2[%c0_1, %c0_2] : memref<32x128xbf16, #tpu.memory_space<vmem>>, vector<32x128xbf16>
    %cst = arith.constant dense<0.000000e+00> : vector<8x128xf32>
    %2 = tpu.matmul %0, %1, %cst {dimension_numbers = #tpu.dot_dimension_numbers<[1], [0], [0], [1], [0, 0, 1, 1], [], []>} : vector<8x32xbf16>, vector<32x128xbf16>, vector<8x128xf32> -> vector<8x128xf32>
    %c0_3 = arith.constant 0 : index
    %c0_4 = arith.constant 0 : index
    %3 = vector.load %arg3[%c0_3, %c0_4] : memref<1x128xf32, #tpu.memory_space<vmem>>, vector<1x128xf32>
    %4 = vector.broadcast %3 : vector<1x128xf32> to vector<8x128xf32>
    %5 = arith.addf %2, %4 : vector<8x128xf32>
    %cst_5 = arith.constant 0.000000e+00 : f32
    %6 = vector.broadcast %cst_5 : f32 to vector<8x128xf32>
    %7 = arith.cmpf oge, %5, %6 : vector<8x128xf32>
    %cst_6 = arith.constant 0.00999999977 : f32
    %8 = vector.broadcast %cst_6 : f32 to vector<8x128xf32>
    %9 = arith.mulf %8, %5 : vector<8x128xf32>
    %10 = arith.select %7, %5, %9 : vector<8x128xi1>, vector<8x128xf32>
    %11 = arith.truncf %10 : vector<8x128xf32> to vector<8x128xbf16>
    %c0_7 = arith.constant 0 : index
    %c0_8 = arith.constant 0 : index
    %12 = vector.load %arg4[%c0_7, %c0_8] : memref<128x128xbf16, #tpu.memory_space<vmem>>, vector<128x128xbf16>
    %cst_9 = arith.constant dense<0.000000e+00> : vector<8x128xf32>
    %13 = tpu.matmul %11, %12, %cst_9 {dimension_numbers = #tpu.dot_dimension_numbers<[1], [0], [0], [1], [0, 0, 1, 1], [], []>} : vector<8x128xbf16>, vector<128x128xbf16>, vector<8x128xf32> -> vector<8x128xf32>
    %c0_10 = arith.constant 0 : index
    %c0_11 = arith.constant 0 : index
    %14 = vector.load %arg5[%c0_10, %c0_11] : memref<1x128xf32, #tpu.memory_space<vmem>>, vector<1x128xf32>
    %15 = vector.broadcast %14 : vector<1x128xf32> to vector<8x128xf32>
    %16 = arith.addf %13, %15 : vector<8x128xf32>
    %17 = tpu.iota {dimensions = array<i32: 1>} : vector<8x128xi32>
    %c16_i32 = arith.constant 16 : i32
    %18 = vector.broadcast %c16_i32 : i32 to vector<8x128xi32>
    %19 = arith.cmpi slt, %17, %18 : vector<8x128xi32>
    %cst_12 = arith.constant -1.000000e+30 : f32
    %20 = vector.broadcast %cst_12 : f32 to vector<8x128xf32>
    %21 = arith.select %19, %16, %20 : vector<8x128xi1>, vector<8x128xf32>
    %cst_13 = arith.constant dense<0xFF800000> : vector<8xf32>
    %22 = vector.multi_reduction <maximumf>, %21, %cst_13 [1] : vector<8x128xf32> to vector<8xf32>
    %23 = vector.shape_cast %22 : vector<8xf32> to vector<8x1xf32>
    %24 = vector.broadcast %23 : vector<8x1xf32> to vector<8x128xf32>
    %25 = arith.subf %21, %24 : vector<8x128xf32>
    %26 = math.exp %25 : vector<8x128xf32>
    %cst_14 = arith.constant dense<0.000000e+00> : vector<8xf32>
    %27 = vector.multi_reduction <add>, %26, %cst_14 [1] : vector<8x128xf32> to vector<8xf32>
    %28 = vector.shape_cast %27 : vector<8xf32> to vector<8x1xf32>
    %29 = math.log %28 : vector<8x1xf32>
    %30 = vector.broadcast %29 : vector<8x1xf32> to vector<8x128xf32>
    %31 = arith.subf %25, %30 : vector<8x128xf32>
    %c0_15 = arith.constant 0 : index
    %c0_16 = arith.constant 0 : index
    %32 = vector.load %arg6[%c0_15, %c0_16] : memref<8x128xf32, #tpu.memory_space<vmem>>, vector<8x128xf32>
    tpu.vector_store %arg6[%c0_15, %c0_16], %31 {strides = array<i32>} : memref<8x128xf32, #tpu.memory_space<vmem>>, vector<8x128xf32>,
    return
  }
  func.func @transform_0(%arg0: i32) -> (i32, i32) {
    %c0_i32 = arith.constant 0 : i32
    %c0_i32_0 = arith.constant 0 : i32
    return %arg0, %c0_i32 : i32, i32
  }
  func.func @transform_1(%arg0: i32) -> (i32, i32) {
    %c0_i32 = arith.constant 0 : i32
    %c0_i32_0 = arith.constant 0 : i32
    %c0_i32_1 = arith.constant 0 : i32
    return %c0_i32, %c0_i32_0 : i32, i32
  }
  func.func @transform_2(%arg0: i32) -> (i32, i32) {
    %c0_i32 = arith.constant 0 : i32
    %c0_i32_0 = arith.constant 0 : i32
    %c0_i32_1 = arith.constant 0 : i32
    return %c0_i32, %c0_i32_0 : i32, i32
  }
  func.func @transform_3(%arg0: i32) -> (i32, i32) {
    %c0_i32 = arith.constant 0 : i32
    %c0_i32_0 = arith.constant 0 : i32
    %c0_i32_1 = arith.constant 0 : i32
    return %c0_i32, %c0_i32_0 : i32, i32
  }
  func.func @transform_4(%arg0: i32) -> (i32, i32) {
    %c0_i32 = arith.constant 0 : i32
    %c0_i32_0 = arith.constant 0 : i32
    %c0_i32_1 = arith.constant 0 : i32
    return %c0_i32, %c0_i32_0 : i32, i32
  }
  func.func @transform_5(%arg0: i32) -> (i32, i32) {
    %c0_i32 = arith.constant 0 : i32
    %c0_i32_0 = arith.constant 0 : i32
    return %arg0, %c0_i32 : i32, i32
  }
}

</mosaic_0001>

<llo_original>
// kernel: tpu_custom_call.1
$region0: #{tpu_custom_call.1}
  #allocation0 [shape = 'u32[]', space=smem, size = 0x4, offset = 0x4, fixed_abs, tag = 'smem constant byte address 0x4 - core index']
  #allocation1 [shape = 'u32[144,128]{1,0:T(1,128)}', space=vmem, size = 0x12000, scoped, tag = 'internal scratch']
  %s0 = inlined_call_operand.hbm [shape: bf16[8,32], index: 0, kind: input, shape index: {}]
  %s1 = inlined_call_operand.hbm [shape: bf16[32,128], index: 1, kind: input, shape index: {}]
  %s2 = inlined_call_operand.vmem [shape: f32[1,128], index: 2, kind: input, shape index: {}]
  %s3 = inlined_call_operand.hbm [shape: bf16[128,128], index: 3, kind: input, shape index: {}]
  %s4 = inlined_call_operand.vmem [shape: f32[1,128], index: 4, kind: input, shape index: {}]
  %s5 = inlined_call_operand.hbm [shape: f32[8,128], index: 5, kind: output, shape index: {}]
  %s6 = sld [smem:[#allocation0]]
  $region42: #{tpu_custom_call.1} parent=0
    _
  %s8 = ssub.s32 1, %s6
  %s9 = scalar_select 0, %s8, %s6
  $region1: #{tpu_custom_call.1} parent=0
    #allocation2 [shape = 'u8[2048]{0}', space=vmem, size = 0x800, scoped, tag = 'input window, operand 0, single buffered']
    #allocation3 [shape = 's32[1]{0}', space=sflag, size = 0x4, scoped, tag = 'scoped memory for tpu_custom_call.1']
    #allocation4 [shape = 's32[1]{0}', space=sflag, size = 0x4, scoped, tag = 'scoped memory for tpu_custom_call.1']
    #allocation5 [shape = 'u8[8192]{0}', space=vmem, size = 0x2000, scoped, tag = 'input window, operand 1, single buffered']
    #allocation6 [shape = 's32[1]{0}', space=sflag, size = 0x4, scoped, tag = 'scoped memory for tpu_custom_call.1']
    #allocation7 [shape = 'u8[32768]{0}', space=vmem, size = 0x8000, scoped, tag = 'input window, operand 3, single buffered']
    #allocation8 [shape = 'u8[4096]{0}', space=vmem, size = 0x1000, scoped, tag = 'output window, operand 0, single buffered']
    %10 = vsyncpa [#allocation3], 0
    %11 = vsyncpa [#allocation6], 0
    %12 = vsyncpa [#allocation4], 0
    // Predicated region
    $region2: #{tpu_custom_call.1} parent=1 // pred_check
      _
    $region3: #{tpu_custom_call.1} parent=1 // pred_check_branch
      %14 = sbr.rel (0) target = $region5
    $region4: #{tpu_custom_call.1} parent=1 // pred_region
      %s16 = ssub.s32 64, 64
      %17 = vsyncadd [#allocation3], %s16
      %s19 = sshll.u32 [#allocation2], 4
      %s20 = int_to_ptr.vmem [resolvable:$true] %s19
      %22 = dma.hbm_to_vmem [thread:$0]  %s0, 64, %s20, [#allocation3]
    $region5: #{tpu_custom_call.1} parent=1 // pred_fallthru
      _
    // Predicated region
    $region6: #{tpu_custom_call.1} parent=1 // pred_check
      _
    $region7: #{tpu_custom_call.1} parent=1 // pred_check_branch
      %24 = sbr.rel (0) target = $region9
    $region8: #{tpu_custom_call.1} parent=1 // pred_region
      %s26 = ssub.s32 256, 256
      %27 = vsyncadd [#allocation6], %s26
      %s28 = sshll.u32 [#allocation5], 4
      %s29 = int_to_ptr.vmem [resolvable:$true] %s28
      %34 = dma.hbm_to_vmem [thread:$0]  %s1, 256, %s29, [#allocation6], 64, 64, 4
    $region9: #{tpu_custom_call.1} parent=1 // pred_fallthru
      _
    // Predicated region
    $region10: #{tpu_custom_call.1} parent=1 // pred_check
      _
    $region11: #{tpu_custom_call.1} parent=1 // pred_check_branch
      %36 = sbr.rel (0) target = $region13
    $region12: #{tpu_custom_call.1} parent=1 // pred_region
      _
    $region13: #{tpu_custom_call.1} parent=1 // pred_fallthru
      _
    // Predicated region
    $region14: #{tpu_custom_call.1} parent=1 // pred_check
      _
    $region15: #{tpu_custom_call.1} parent=1 // pred_check_branch
      %38 = sbr.rel (0) target = $region17
    $region16: #{tpu_custom_call.1} parent=1 // pred_region
      %s40 = ssub.s32 1024, 1024
      %41 = vsyncadd [#allocation6], %s40
      %s42 = sshll.u32 [#allocation7], 4
      %s43 = int_to_ptr.vmem [resolvable:$true] %s42
      %48 = dma.hbm_to_vmem [thread:$0]  %s3, 1024, %s43, [#allocation6], 64, 64, 4
    $region17: #{tpu_custom_call.1} parent=1 // pred_fallthru
      _
    // Predicated region
    $region18: #{tpu_custom_call.1} parent=1 // pred_check
      _
    $region19: #{tpu_custom_call.1} parent=1 // pred_check_branch
      %50 = sbr.rel (0) target = $region21
    $region20: #{tpu_custom_call.1} parent=1 // pred_region
      _
    $region21: #{tpu_custom_call.1} parent=1 // pred_fallthru
      _
    // Predicated region
    $region22: #{tpu_custom_call.1} parent=1 // pred_check
      _
    $region23: #{tpu_custom_call.1} parent=1 // pred_check_branch
      %52 = sbr.rel (0) target = $region25
    $region24: #{tpu_custom_call.1} parent=1 // pred_region
      %53 = dma.done [#allocation3], 64
    $region25: #{tpu_custom_call.1} parent=1 // pred_fallthru
      _
    // Predicated region
    $region26: #{tpu_custom_call.1} parent=1 // pred_check
      _
    $region27: #{tpu_custom_call.1} parent=1 // pred_check_branch
      %55 = sbr.rel (0) target = $region29
    $region28: #{tpu_custom_call.1} parent=1 // pred_region
      %56 = dma.done [#allocation6], 256
    $region29: #{tpu_custom_call.1} parent=1 // pred_fallthru
      _
    // Predicated region
    $region30: #{tpu_custom_call.1} parent=1 // pred_check
      _
    $region31: #{tpu_custom_call.1} parent=1 // pred_check_branch
      %58 = sbr.rel (0) target = $region33
    $region32: #{tpu_custom_call.1} parent=1 // pred_region
      %59 = dma.done [#allocation6], 1024
    $region33: #{tpu_custom_call.1} parent=1 // pred_fallthru
      _
    %v61 = vld [vmem:[#allocation2] sm:$0xf]
    %v62 = vld [vmem:[#allocation5] sm:$0xf]
    %v63 = vld [vmem:[#allocation5 + $0x4] sm:$0xf]
    %v64 = vld [vmem:[#allocation5 + $0x8] sm:$0xf]
    %v65 = vld [vmem:[#allocation5 + $0xc] sm:$0xf]
    %v66 = vld [vmem:[%s2] sm:$0x1]
    %v68 = vlaneseq
    %v69 = vshrl.u32 %v68, 7
    %v70 = vsub.s32 0, %v69
    %v71 = vrot.slane %v66, %v70
    %v77 = vunpack.c.l.b16 %v62
    %v78 = vunpack.c.l.b16 %v63
    %v79 = vunpack.c.l.b16 %v64
    %v80 = vunpack.c.l.b16 %v65
    %v81 = vpack.c.b16 %v78, %v77
    %v82 = vpack.c.b16 %v80, %v79
    %vm85 = vcmask 261120
    %v87 = vsel %vm85, %v61, 0
    %89 = vmatprep.subr.bf16.mxu0 0
    %90 = vmatpush1.bf16.msra.mxu0 %v81
    %91 = vmatprep.subr.bf16.mxu0 0
    %92 = vmatpush1.bf16.msra.mxu0 %v82
    %93 = vmatprep.subr.bf16.mxu0 0
    %94 = vmatpush1.bf16.msra.mxu0 0
    %95 = vmatprep.subr.bf16.mxu0 0
    %96 = vmatpush1.bf16.msra.mxu0 0
    %97 = vmatprep.subr.bf16.mxu0 0
    %98 = vmatpush1.bf16.msra.mxu0 0
    %99 = vmatprep.subr.bf16.mxu0 0
    %100 = vmatpush1.bf16.msra.mxu0 0
    %101 = vmatprep.subr.bf16.mxu0 0
    %102 = vmatpush1.bf16.msra.mxu0 0
    %103 = vmatprep.subr.bf16.mxu0 0
    %104 = vmatpush1.bf16.msra.mxu0 0
    %105 = vmatprep.subr.bf16.mxu0 0
    %106 = vmatpush1.bf16.msra.mxu0 0
    %107 = vmatprep.subr.bf16.mxu0 0
    %108 = vmatpush1.bf16.msra.mxu0 0
    %109 = vmatprep.subr.bf16.mxu0 0
    %110 = vmatpush1.bf16.msra.mxu0 0
    %111 = vmatprep.subr.bf16.mxu0 0
    %112 = vmatpush1.bf16.msra.mxu0 0
    %113 = vmatprep.subr.bf16.mxu0 0
    %114 = vmatpush1.bf16.msra.mxu0 0
    %115 = vmatprep.subr.bf16.mxu0 0
    %116 = vmatpush1.bf16.msra.mxu0 0
    %117 = vmatprep.subr.bf16.mxu0 0
    %118 = vmatpush1.bf16.msra.mxu0 0
    %119 = vmatprep.subr.bf16.mxu0 0
    %120 = vmatpush1.bf16.msra.mxu0 0
    %121 = vmatprep.mubr.bf16.mxu0 0
    %122 = vmatmul.mubr.bf16.gmra.mrb[0].mxu0 %v87
    %v123 = vpop.f32.mrb[0].mxu0
    %v124 = vadd.f32 %v71, %v123
    %v125 = vpop.f32.mrb[0].mxu0
    %v126 = vpop.f32.mrb[0].mxu0
    %v127 = vpop.f32.mrb[0].mxu0
    %128 = vdwg.mxu0
    %vm129 = vcmp.ge.f32.partialorder %v124, 0.0
    %v130 = vmul.f32 %v124, 0.01
    %v131 = vsel %vm129, %v124, %v130
    %v132 = vpack.c.bf16 %v131, %v131
    %v133 = vld [vmem:[#allocation7] sm:$0xf]
    %v134 = vld [vmem:[#allocation7 + $0x4] sm:$0xf]
    %v135 = vld [vmem:[#allocation7 + $0x8] sm:$0xf]
    %v136 = vld [vmem:[#allocation7 + $0xc] sm:$0xf]
    %v137 = vld [vmem:[#allocation7 + $0x10] sm:$0xf]
    %v138 = vld [vmem:[#allocation7 + $0x14] sm:$0xf]
    %v139 = vld [vmem:[#allocation7 + $0x18] sm:$0xf]
    %v140 = vld [vmem:[#allocation7 + $0x1c] sm:$0xf]
    %v141 = vld [vmem:[#allocation7 + $0x20] sm:$0xf]
    %v142 = vld [vmem:[#allocation7 + $0x24] sm:$0xf]
    %v143 = vld [vmem:[#allocation7 + $0x28] sm:$0xf]
    %v144 = vld [vmem:[#allocation7 + $0x2c] sm:$0xf]
    %v145 = vld [vmem:[#allocation7 + $0x30] sm:$0xf]
    %v146 = vld [vmem:[#allocation7 + $0x34] sm:$0xf]
    %v147 = vld [vmem:[#allocation7 + $0x38] sm:$0xf]
    %v148 = vld [vmem:[#allocation7 + $0x3c] sm:$0xf]
    %v149 = vld [vmem:[%s4] sm:$0x1]
    %v151 = vlaneseq
    %v152 = vshrl.u32 %v151, 7
    %v153 = vsub.s32 0, %v152
    %v154 = vrot.slane %v149, %v153
    %v172 = vunpack.c.l.b16 %v133
    %v173 = vunpack.c.l.b16 %v134
    %v174 = vunpack.c.l.b16 %v135
    %v175 = vunpack.c.l.b16 %v136
    %v176 = vunpack.c.l.b16 %v137
    %v177 = vunpack.c.l.b16 %v138
    %v178 = vunpack.c.l.b16 %v139
    %v179 = vunpack.c.l.b16 %v140
    %v180 = vunpack.c.l.b16 %v141
    %v181 = vunpack.c.l.b16 %v142
    %v182 = vunpack.c.l.b16 %v143
    %v183 = vunpack.c.l.b16 %v144
    %v184 = vunpack.c.l.b16 %v145
    %v185 = vunpack.c.l.b16 %v146
    %v186 = vunpack.c.l.b16 %v147
    %v187 = vunpack.c.l.b16 %v148
    %v188 = vpack.c.b16 %v173, %v172
    %v189 = vpack.c.b16 %v175, %v174
    %v190 = vpack.c.b16 %v177, %v176
    %v191 = vpack.c.b16 %v179, %v178
    %v192 = vpack.c.b16 %v181, %v180
    %v193 = vpack.c.b16 %v183, %v182
    %v194 = vpack.c.b16 %v185, %v184
    %v195 = vpack.c.b16 %v187, %v186
    %204 = vmatprep.subr.bf16.mxu0 0
    %205 = vmatpush1.bf16.msra.mxu0 %v188
    %206 = vmatprep.subr.bf16.mxu0 0
    %207 = vmatpush1.bf16.msra.mxu0 %v189
    %208 = vmatprep.subr.bf16.mxu0 0
    %209 = vmatpush1.bf16.msra.mxu0 %v190
    %210 = vmatprep.subr.bf16.mxu0 0
    %211 = vmatpush1.bf16.msra.mxu0 %v191
    %212 = vmatprep.subr.bf16.mxu0 0
    %213 = vmatpush1.bf16.msra.mxu0 %v192
    %214 = vmatprep.subr.bf16.mxu0 0
    %215 = vmatpush1.bf16.msra.mxu0 %v193
    %216 = vmatprep.subr.bf16.mxu0 0
    %217 = vmatpush1.bf16.msra.mxu0 %v194
    %218 = vmatprep.subr.bf16.mxu0 0
    %219 = vmatpush1.bf16.msra.mxu0 %v195
    %220 = vmatprep.subr.bf16.mxu0 0
    %221 = vmatpush1.bf16.msra.mxu0 0
    %222 = vmatprep.subr.bf16.mxu0 0
    %223 = vmatpush1.bf16.msra.mxu0 0
    %224 = vmatprep.subr.bf16.mxu0 0
    %225 = vmatpush1.bf16.msra.mxu0 0
    %226 = vmatprep.subr.bf16.mxu0 0
    %227 = vmatpush1.bf16.msra.mxu0 0
    %228 = vmatprep.subr.bf16.mxu0 0
    %229 = vmatpush1.bf16.msra.mxu0 0
    %230 = vmatprep.subr.bf16.mxu0 0
    %231 = vmatpush1.bf16.msra.mxu0 0
    %232 = vmatprep.subr.bf16.mxu0 0
    %233 = vmatpush1.bf16.msra.mxu0 0
    %234 = vmatprep.subr.bf16.mxu0 0
    %235 = vmatpush1.bf16.msra.mxu0 0
    %236 = vmatprep.mubr.bf16.mxu0 0
    %237 = vmatmul.mubr.bf16.gmra.mrb[0].mxu0 %v132
    %v238 = vpop.f32.mrb[0].mxu0
    %v239 = vadd.f32 %v154, %v238
    %v240 = vpop.f32.mrb[0].mxu0
    %v241 = vpop.f32.mrb[0].mxu0
    %v242 = vpop.f32.mrb[0].mxu0
    %243 = vdwg.mxu0
    %v244 = vlaneseq
    %v245 = vand.u32 %v244, 127
    %vm246 = vcmp.lt.s32.totalorder %v245, 16
    %v247 = vsel %vm246, %v239, -1e+30
    %248 = vmax.xlane.f32.xlu0 %v247
    %v249 = vpop.xlane.xlu0 %248
    %v250 = vsub.f32 %v247, %v249
    %v251 = vmul.f32 %v250, 1.442695
    %v252 = vpow.pop %v251
    %253 = vadd.xlane.f32.xlu0 %v252
    %v254 = vpop.xlane.xlu0 %253
    %v255 = vlog2.pop %v254
    %v256 = vmul.f32 %v255, 0.6931472
    %v257 = vsub.f32 %v250, %v256
    %258 = vst [vmem:[#allocation8] sm:$0xff] %v257
    // Predicated region
    $region34: #{tpu_custom_call.1} parent=1 // pred_check
      _
    $region35: #{tpu_custom_call.1} parent=1 // pred_check_branch
      %260 = sbr.rel (0) target = $region37
    $region36: #{tpu_custom_call.1} parent=1 // pred_region
      %s262 = ssub.s32 128, 128
      %263 = vsyncadd [#allocation4], %s262
      %s265 = sshll.u32 [#allocation8], 4
      %s266 = int_to_ptr.vmem [resolvable:$true] %s265
      %268 = dma.vmem_to_hbm [thread:$0]  %s266, 128, %s5, [#allocation4]
    $region37: #{tpu_custom_call.1} parent=1 // pred_fallthru
      _
    // Predicated region
    $region38: #{tpu_custom_call.1} parent=1 // pred_check
      _
    $region39: #{tpu_custom_call.1} parent=1 // pred_check_branch
      %270 = sbr.rel (0) target = $region41
    $region40: #{tpu_custom_call.1} parent=1 // pred_region
      %271 = dma.done [#allocation4], 128
    $region41: #{tpu_custom_call.1} parent=1 // pred_fallthru
      _
    %272 = vsyncpa [#allocation3], 1
    %273 = vsyncpa [#allocation6], 1
    %274 = vsyncpa [#allocation4], 1

</llo_original>
